<compile_context>
chip_gen: v7x
topology: tpu7x:2x2x1
jax: 0.10.0
libtpu: 0.0.40
codegen_flags: <defaults>
</compile_context>

<pallas_src>
import math
import functools

import jax
import jax.numpy as jnp
from jax.experimental import pallas as pl
from jax.experimental.pallas import tpu as pltpu


def _round_up(x, m):
    return (x + m - 1) // m * m


def _pad2(a, d0, d1):
    p0, p1 = d0 - a.shape[0], d1 - a.shape[1]
    if p0 == 0 and p1 == 0:
        return a
    return jnp.pad(a, ((0, p0), (0, p1)))


def _lora_kernel(x_ref, w_ref, bias_ref, xa_ref, b_ref, o_ref, acc_ref):
    k = pl.program_id(2)

    @pl.when(k == 0)
    def _():
        # Fold the bias into the accumulator init (saves a (tm, tn) f32 add
        # + cast in the epilogue).
        acc_ref[...] = jnp.broadcast_to(
            bias_ref[...].astype(jnp.float32), acc_ref.shape)

    # Dense path: x @ W, weight pre-laid-out as (K, N) -> plain MXU matmul,
    # no transpose anywhere.
    acc_ref[...] += jnp.dot(x_ref[...], w_ref[...],
                            preferred_element_type=jnp.float32)

    @pl.when(k == pl.num_programs(2) - 1)
    def _():
        # LoRA epilogue: xa (already scaled by alpha/r, bf16) @ B (bf16),
        # native bf16xbf16 -> f32 MXU path.  A@B is never materialized.
        lora = jnp.dot(xa_ref[...], b_ref[...],
                       preferred_element_type=jnp.float32)
        o_ref[...] = (acc_ref[...] + lora).astype(o_ref.dtype)


def prepare_lora_params(weight, bias, lora_a, lora_b, *, alpha, r,
                        tn_cap=512, tk_cap=1024):
    """One-time parameter preparation (layer construction time).

    weight: (out, in) bf16 (PyTorch layout) -> stored padded as (K, N).
    bias:   (out,)  -> (1, N) padded.
    lora_a: (in, r) -> kept raw (used only in the tiny per-call pre-pass).
    lora_b: (r, out) -> (r_pad=128k, N) padded, lane-dense.
    """
    out_features, in_features = weight.shape
    tn = min(tn_cap, _round_up(out_features, 128))
    tk = min(tk_cap, _round_up(in_features, 128))
    n_p = _round_up(out_features, tn)
    k_p = _round_up(in_features, tk)
    r_p = _round_up(r, 128)

    params = dict(
        w_kn=_pad2(weight.T, k_p, n_p),                       # (K, N) canonical
        bias_p=_pad2(bias.reshape(1, out_features), 1, n_p),  # (1, N)
        lora_a=lora_a,                                        # (in, r) raw
        lora_b_p=_pad2(lora_b, r_p, n_p),                     # (r_pad, N)
        scale=float(alpha) / float(r),
        in_features=in_features,
        out_features=out_features,
        tn=tn, tk=tk, n_p=n_p, k_p=k_p, r_p=r_p,
    )
    return params


def lora_linear(x, params):
    """x: (..., in_features) bf16.  Returns (..., out_features) in x's dtype."""
    in_features = params["in_features"]
    out_features = params["out_features"]
    tn, tk = params["tn"], params["tk"]
    n_p, k_p, r_p = params["n_p"], params["k_p"], params["r_p"]

    lead = x.shape[:-1]
    m = int(math.prod(lead)) if lead else 1
    x2 = x.reshape(m, in_features)

    # Tile sizes: lane dims multiples of 128, sublane dim multiple of 16 (bf16).
    tm = min(512, _round_up(max(m, 1), 16))
    m_p = _round_up(m, tm)

    # Rank-r pre-pass (hoisted out of the kernel grid so it is computed once,
    # not once per N tile): xa = (x @ A) * alpha/r, f32 accumulate, bf16 store.
    xa = (jnp.dot(x2, params["lora_a"], preferred_element_type=jnp.float32)
          * params["scale"]).astype(x.dtype)

    x_p = _pad2(x2, m_p, k_p)
    xa_p = _pad2(xa, m_p, r_p)

    grid = (m_p // tm, n_p // tn, k_p // tk)

    out = pl.pallas_call(
        _lora_kernel,
        out_shape=jax.ShapeDtypeStruct((m_p, n_p), x.dtype),
        grid_spec=pltpu.PrefetchScalarGridSpec(
            num_scalar_prefetch=0,
            grid=grid,
            in_specs=[
                pl.BlockSpec((tm, tk), lambda i, j, k: (i, k)),    # x
                pl.BlockSpec((tk, tn), lambda i, j, k: (k, j)),    # W  (K, N)
                pl.BlockSpec((1, tn), lambda i, j, k: (0, j)),     # bias
                pl.BlockSpec((tm, r_p), lambda i, j, k: (i, 0)),   # xa (per-i only)
                pl.BlockSpec((r_p, tn), lambda i, j, k: (0, j)),   # lora_b
            ],
            out_specs=pl.BlockSpec((tm, tn), lambda i, j, k: (i, j)),
            scratch_shapes=[
                pltpu.VMEM((tm, tn), jnp.float32),   # dense accumulator
            ],
        ),
        compiler_params=pltpu.CompilerParams(
            dimension_semantics=("parallel", "parallel", "arbitrary"),
            vmem_limit_bytes=32 * 1024 * 1024),
        cost_estimate=pl.CostEstimate(
            flops=2 * m_p * k_p * n_p + 2 * m_p * r_p * n_p,
            transcendentals=0,
            bytes_accessed=2 * (m_p * k_p + k_p * n_p + m_p * n_p
                                + m_p * r_p + r_p * n_p + n_p),
        ),
    )(x_p, params["w_kn"], params["bias_p"], xa_p, params["lora_b_p"])

    out = out[:m, :out_features]
    return out.reshape(*lead, out_features)


def init_params(key, in_features, out_features, r):
    """Deterministic init mirroring the PyTorch module's __init__."""
    k_w, k_b, k_a = jax.random.split(key, 3)
    # nn.Linear default: kaiming_uniform_(a=sqrt(5)) -> U(-1/sqrt(in), 1/sqrt(in))
    w_bound = 1.0 / math.sqrt(in_features)
    weight = jax.random.uniform(k_w, (out_features, in_features),
                                jnp.float32, -w_bound, w_bound).astype(jnp.bfloat16)
    bias = jax.random.uniform(k_b, (out_features,),
                              jnp.float32, -w_bound, w_bound).astype(jnp.bfloat16)
    # lora_a: kaiming_uniform_(a=sqrt(5)) on (in_features, r) -> fan_in = r
    a_bound = 1.0 / math.sqrt(r)
    lora_a = jax.random.uniform(k_a, (in_features, r),
                                jnp.float32, -a_bound, a_bound).astype(jnp.bfloat16)
    # lora_b: zeros (as in the module)
    lora_b = jnp.zeros((r, out_features), jnp.bfloat16)
    return weight, bias, lora_a, lora_b


def reference(x, weight, bias, lora_a, lora_b, *, alpha, r):
    raw = (jnp.dot(x.astype(jnp.float32), weight.T.astype(jnp.float32))
           + bias.astype(jnp.float32))
    ab = jnp.dot(lora_a.astype(jnp.float32), lora_b.astype(jnp.float32)) * (alpha / r)
    lora = jnp.dot(x.astype(jnp.float32), ab)
    return raw + lora


if __name__ == "__main__":
    in_features, out_features, r, alpha = 32, 32, 8, 16
    batch, seq = 2, 8

    key = jax.random.PRNGKey(0)
    k_x, k_p, k_b2 = jax.random.split(key, 3)
    x = jax.random.normal(k_x, (batch, seq, in_features), jnp.float32).astype(jnp.bfloat16)
    weight, bias, lora_a, lora_b = init_params(k_p, in_features, out_features, r)

    # Case 1: module's actual init (lora_b == 0).
    params = prepare_lora_params(weight, bias, lora_a, lora_b, alpha=alpha, r=r)
    out = lora_linear(x, params)
    out = jax.block_until_ready(out)
    ref = reference(x, weight, bias, lora_a, lora_b, alpha=alpha, r=r)
    assert out.shape == (batch, seq, out_features)
    assert out.dtype == jnp.bfloat16
    err = jnp.max(jnp.abs(out.astype(jnp.float32) - ref))
    assert float(err) < 0.1, f"max abs error (zero lora_b) {err}"

    # Case 2: non-zero lora_b so the LoRA path is actually exercised.
    lora_b2 = jax.random.uniform(k_b2, (r, out_features),
                                 jnp.float32, -0.05, 0.05).astype(jnp.bfloat16)
    params2 = prepare_lora_params(weight, bias, lora_a, lora_b2, alpha=alpha, r=r)
    out2 = lora_linear(x, params2)
    out2 = jax.block_until_ready(out2)
    ref2 = reference(x, weight, bias, lora_a, lora_b2, alpha=alpha, r=r)
    err2 = jnp.max(jnp.abs(out2.astype(jnp.float32) - ref2))
    assert float(err2) < 0.1, f"max abs error (nonzero lora_b) {err2}"

    print("KERNEL_OK")
</pallas_src>

<mosaic_0001>
module attributes {stable_mosaic.version = 11 : i64} {
  func.func @_lora_kernel(%arg0: i32, %arg1: i32, %arg2: i32, %arg3: memref<16x128xbf16, #tpu.memory_space<vmem>>, %arg4: memref<128x128xbf16, #tpu.memory_space<vmem>>, %arg5: memref<1x128xbf16, #tpu.memory_space<vmem>>, %arg6: memref<16x128xbf16, #tpu.memory_space<vmem>>, %arg7: memref<128x128xbf16, #tpu.memory_space<vmem>>, %arg8: memref<16x128xbf16, #tpu.memory_space<vmem>>, %arg9: memref<16x128xf32, #tpu.memory_space<vmem>>) attributes {dimension_semantics = [#tpu.dimension_semantics<parallel>, #tpu.dimension_semantics<parallel>, #tpu.dimension_semantics<arbitrary>], iteration_bounds = array<i64: 1, 1, 1>, scalar_prefetch = 0 : i64, scratch_operands = 1 : i64, tpu.core_type = #tpu.core_type<tc>, window_params = [{transform_indices = @transform_0, window_bounds = array<i64: 16, 128>}, {transform_indices = @transform_1, window_bounds = array<i64: 128, 128>}, {transform_indices = @transform_2, window_bounds = array<i64: 1, 128>}, {transform_indices = @transform_3, window_bounds = array<i64: 16, 128>}, {transform_indices = @transform_4, window_bounds = array<i64: 128, 128>}, {transform_indices = @transform_5, window_bounds = array<i64: 16, 128>}]} {
    %c0_i32 = arith.constant 0 : i32
    %0 = arith.cmpi eq, %arg2, %c0_i32 : i32
    %1 = arith.extui %0 : i1 to i32
    %c0_i32_0 = arith.constant 0 : i32
    %2 = arith.cmpi ne, %1, %c0_i32_0 : i32
    scf.if %2 {
      %c0_10 = arith.constant 0 : index
      %c0_11 = arith.constant 0 : index
      %12 = vector.load %arg5[%c0_10, %c0_11] : memref<1x128xbf16, #tpu.memory_space<vmem>>, vector<1x128xbf16>
      %13 = arith.extf %12 : vector<1x128xbf16> to vector<1x128xf32>
      %14 = vector.shape_cast %13 : vector<1x128xf32> to vector<1x128xf32>
      %15 = vector.broadcast %14 : vector<1x128xf32> to vector<16x128xf32>
      %c0_12 = arith.constant 0 : index
      %c0_13 = arith.constant 0 : index
      %16 = vector.load %arg9[%c0_12, %c0_13] : memref<16x128xf32, #tpu.memory_space<vmem>>, vector<16x128xf32>
      tpu.vector_store %arg9[%c0_12, %c0_13], %15 {strides = array<i32>} : memref<16x128xf32, #tpu.memory_space<vmem>>, vector<16x128xf32>,
    } else {
    }
    %c0 = arith.constant 0 : index
    %c0_1 = arith.constant 0 : index
    %3 = vector.load %arg9[%c0, %c0_1] : memref<16x128xf32, #tpu.memory_space<vmem>>, vector<16x128xf32>
    %c0_2 = arith.constant 0 : index
    %c0_3 = arith.constant 0 : index
    %4 = vector.load %arg3[%c0_2, %c0_3] : memref<16x128xbf16, #tpu.memory_space<vmem>>, vector<16x128xbf16>
    %c0_4 = arith.constant 0 : index
    %c0_5 = arith.constant 0 : index
    %5 = vector.load %arg4[%c0_4, %c0_5] : memref<128x128xbf16, #tpu.memory_space<vmem>>, vector<128x128xbf16>
    %cst = arith.constant dense<0.000000e+00> : vector<16x128xf32>
    %6 = tpu.matmul %4, %5, %cst {dimension_numbers = #tpu.dot_dimension_numbers<[1], [0], [0], [1], [0, 0, 1, 1], [], []>} : vector<16x128xbf16>, vector<128x128xbf16>, vector<16x128xf32> -> vector<16x128xf32>
    %7 = arith.addf %3, %6 : vector<16x128xf32>
    %c0_6 = arith.constant 0 : index
    %c0_7 = arith.constant 0 : index
    %8 = vector.load %arg9[%c0_6, %c0_7] : memref<16x128xf32, #tpu.memory_space<vmem>>, vector<16x128xf32>
    tpu.vector_store %arg9[%c0_6, %c0_7], %7 {strides = array<i32>} : memref<16x128xf32, #tpu.memory_space<vmem>>, vector<16x128xf32>,
    %c0_i32_8 = arith.constant 0 : i32
    %9 = arith.cmpi eq, %arg2, %c0_i32_8 : i32
    %10 = arith.extui %9 : i1 to i32
    %c0_i32_9 = arith.constant 0 : i32
    %11 = arith.cmpi ne, %10, %c0_i32_9 : i32
    scf.if %11 {
      %c0_10 = arith.constant 0 : index
      %c0_11 = arith.constant 0 : index
      %12 = vector.load %arg6[%c0_10, %c0_11] : memref<16x128xbf16, #tpu.memory_space<vmem>>, vector<16x128xbf16>
      %c0_12 = arith.constant 0 : index
      %c0_13 = arith.constant 0 : index
      %13 = vector.load %arg7[%c0_12, %c0_13] : memref<128x128xbf16, #tpu.memory_space<vmem>>, vector<128x128xbf16>
      %cst_14 = arith.constant dense<0.000000e+00> : vector<16x128xf32>
      %14 = tpu.matmul %12, %13, %cst_14 {dimension_numbers = #tpu.dot_dimension_numbers<[1], [0], [0], [1], [0, 0, 1, 1], [], []>} : vector<16x128xbf16>, vector<128x128xbf16>, vector<16x128xf32> -> vector<16x128xf32>
      %c0_15 = arith.constant 0 : index
      %c0_16 = arith.constant 0 : index
      %15 = vector.load %arg9[%c0_15, %c0_16] : memref<16x128xf32, #tpu.memory_space<vmem>>, vector<16x128xf32>
      %16 = arith.addf %15, %14 : vector<16x128xf32>
      %17 = arith.truncf %16 : vector<16x128xf32> to vector<16x128xbf16>
      %c0_17 = arith.constant 0 : index
      %c0_18 = arith.constant 0 : index
      %18 = vector.load %arg8[%c0_17, %c0_18] : memref<16x128xbf16, #tpu.memory_space<vmem>>, vector<16x128xbf16>
      tpu.vector_store %arg8[%c0_17, %c0_18], %17 {strides = array<i32>} : memref<16x128xbf16, #tpu.memory_space<vmem>>, vector<16x128xbf16>,
    } else {
    }
    return
  }
  func.func @transform_0(%arg0: i32, %arg1: i32, %arg2: i32) -> (i32, i32) {
    %c0_i32 = arith.constant 0 : i32
    return %arg0, %arg2 : i32, i32
  }
  func.func @transform_1(%arg0: i32, %arg1: i32, %arg2: i32) -> (i32, i32) {
    %c0_i32 = arith.constant 0 : i32
    return %arg2, %arg1 : i32, i32
  }
  func.func @transform_2(%arg0: i32, %arg1: i32, %arg2: i32) -> (i32, i32) {
    %c0_i32 = arith.constant 0 : i32
    %c0_i32_0 = arith.constant 0 : i32
    return %c0_i32, %arg1 : i32, i32
  }
  func.func @transform_3(%arg0: i32, %arg1: i32, %arg2: i32) -> (i32, i32) {
    %c0_i32 = arith.constant 0 : i32
    %c0_i32_0 = arith.constant 0 : i32
    return %arg0, %c0_i32 : i32, i32
  }
  func.func @transform_4(%arg0: i32, %arg1: i32, %arg2: i32) -> (i32, i32) {
    %c0_i32 = arith.constant 0 : i32
    %c0_i32_0 = arith.constant 0 : i32
    return %c0_i32, %arg1 : i32, i32
  }
  func.func @transform_5(%arg0: i32, %arg1: i32, %arg2: i32) -> (i32, i32) {
    %c0_i32 = arith.constant 0 : i32
    return %arg0, %arg1 : i32, i32
  }
}

</mosaic_0001>

<llo_original>
// kernel: tpu_custom_call.1
$region0: #{tpu_custom_call.1}
  #allocation0 [shape = 'u32[]', space=smem, size = 0x4, offset = 0x4, fixed_abs, tag = 'smem constant byte address 0x4 - core index']
  #allocation1 [shape = 'u32[144,128]{1,0:T(1,128)}', space=vmem, size = 0x12000, scoped, tag = 'internal scratch']
  #allocation2 [shape = 'f32[16,128]{1,0:T(8,128)}', space=vmem, size = 0x2000, scoped, tag = 'scratch operand']
  %s0 = inlined_call_operand.hbm [shape: bf16[16,128], index: 0, kind: input, shape index: {}]
  %s1 = inlined_call_operand.hbm [shape: bf16[128,128], index: 1, kind: input, shape index: {}]
  %s2 = inlined_call_operand.vmem [shape: bf16[1,128], index: 2, kind: input, shape index: {}]
  %s3 = inlined_call_operand.vmem [shape: bf16[16,128], index: 3, kind: input, shape index: {}]
  %s4 = inlined_call_operand.hbm [shape: bf16[128,128], index: 4, kind: input, shape index: {}]
  %s5 = inlined_call_operand.hbm [shape: bf16[16,128], index: 5, kind: output, shape index: {}]
  %s6 = sld [smem:[#allocation0]]
  $region50: #{tpu_custom_call.1} parent=0
    _
  %s8 = ssub.s32 1, %s6
  %s9 = scalar_select 0, %s8, %s6
  $region1: #{tpu_custom_call.1} parent=0
    #allocation3 [shape = 'u8[4096]{0}', space=vmem, size = 0x1000, scoped, tag = 'input window, operand 0, single buffered']
    #allocation4 [shape = 's32[1]{0}', space=sflag, size = 0x4, scoped, tag = 'scoped memory for tpu_custom_call.1']
    #allocation5 [shape = 's32[1]{0}', space=sflag, size = 0x4, scoped, tag = 'scoped memory for tpu_custom_call.1']
    #allocation6 [shape = 'u8[32768]{0}', space=vmem, size = 0x8000, scoped, tag = 'input window, operand 1, single buffered']
    #allocation7 [shape = 's32[1]{0}', space=sflag, size = 0x4, scoped, tag = 'scoped memory for tpu_custom_call.1']
    #allocation8 [shape = 'u8[32768]{0}', space=vmem, size = 0x8000, scoped, tag = 'input window, operand 4, single buffered']
    #allocation9 [shape = 'u8[4096]{0}', space=vmem, size = 0x1000, scoped, tag = 'output window, operand 0, single buffered']
    %10 = vsyncpa [#allocation4], 0
    %11 = vsyncpa [#allocation7], 0
    %12 = vsyncpa [#allocation5], 0
    // Predicated region
    $region2: #{tpu_custom_call.1} parent=1 // pred_check
      _
    $region3: #{tpu_custom_call.1} parent=1 // pred_check_branch
      %14 = sbr.rel (0) target = $region5
    $region4: #{tpu_custom_call.1} parent=1 // pred_region
      %s16 = ssub.s32 128, 128
      %17 = vsyncadd [#allocation4], %s16
      %s18 = sshll.u32 [#allocation3], 4
      %s19 = int_to_ptr.vmem [resolvable:$true] %s18
      %24 = dma.hbm_to_vmem [thread:$0]  %s0, 128, %s19, [#allocation4], 64, 64, 4
    $region5: #{tpu_custom_call.1} parent=1 // pred_fallthru
      _
    // Predicated region
    $region6: #{tpu_custom_call.1} parent=1 // pred_check
      _
    $region7: #{tpu_custom_call.1} parent=1 // pred_check_branch
      %26 = sbr.rel (0) target = $region9
    $region8: #{tpu_custom_call.1} parent=1 // pred_region
      %s28 = ssub.s32 1024, 1024
      %29 = vsyncadd [#allocation7], %s28
      %s30 = sshll.u32 [#allocation6], 4
      %s31 = int_to_ptr.vmem [resolvable:$true] %s30
      %36 = dma.hbm_to_vmem [thread:$0]  %s1, 1024, %s31, [#allocation7], 64, 64, 4
    $region9: #{tpu_custom_call.1} parent=1 // pred_fallthru
      _
    // Predicated region
    $region10: #{tpu_custom_call.1} parent=1 // pred_check
      _
    $region11: #{tpu_custom_call.1} parent=1 // pred_check_branch
      %38 = sbr.rel (0) target = $region13
    $region12: #{tpu_custom_call.1} parent=1 // pred_region
      _
    $region13: #{tpu_custom_call.1} parent=1 // pred_fallthru
      _
    // Predicated region
    $region14: #{tpu_custom_call.1} parent=1 // pred_check
      _
    $region15: #{tpu_custom_call.1} parent=1 // pred_check_branch
      %40 = sbr.rel (0) target = $region17
    $region16: #{tpu_custom_call.1} parent=1 // pred_region
      _
    $region17: #{tpu_custom_call.1} parent=1 // pred_fallthru
      _
    // Predicated region
    $region18: #{tpu_custom_call.1} parent=1 // pred_check
      _
    $region19: #{tpu_custom_call.1} parent=1 // pred_check_branch
      %42 = sbr.rel (0) target = $region21
    $region20: #{tpu_custom_call.1} parent=1 // pred_region
      %s44 = ssub.s32 1024, 1024
      %45 = vsyncadd [#allocation7], %s44
      %s46 = sshll.u32 [#allocation8], 4
      %s47 = int_to_ptr.vmem [resolvable:$true] %s46
      %52 = dma.hbm_to_vmem [thread:$0]  %s4, 1024, %s47, [#allocation7], 64, 64, 4
    $region21: #{tpu_custom_call.1} parent=1 // pred_fallthru
      _
    // Predicated region
    $region22: #{tpu_custom_call.1} parent=1 // pred_check
      _
    $region23: #{tpu_custom_call.1} parent=1 // pred_check_branch
      %54 = sbr.rel (0) target = $region25
    $region24: #{tpu_custom_call.1} parent=1 // pred_region
      %55 = dma.done [#allocation4], 128
    $region25: #{tpu_custom_call.1} parent=1 // pred_fallthru
      _
    // Predicated region
    $region26: #{tpu_custom_call.1} parent=1 // pred_check
      _
    $region27: #{tpu_custom_call.1} parent=1 // pred_check_branch
      %57 = sbr.rel (0) target = $region29
    $region28: #{tpu_custom_call.1} parent=1 // pred_region
      %58 = dma.done [#allocation7], 1024
    $region29: #{tpu_custom_call.1} parent=1 // pred_fallthru
      _
    // Predicated region
    $region30: #{tpu_custom_call.1} parent=1 // pred_check
      _
    $region31: #{tpu_custom_call.1} parent=1 // pred_check_branch
      %60 = sbr.rel (0) target = $region33
    $region32: #{tpu_custom_call.1} parent=1 // pred_region
      %61 = dma.done [#allocation7], 1024
    $region33: #{tpu_custom_call.1} parent=1 // pred_fallthru
      _
    %p63 = scmp.eq.s32.totalorder 0, 0
    // Predicated region
    $region34: #{tpu_custom_call.1} parent=1 // pred_check
      %p64 = pneg %p63
    $region35: #{tpu_custom_call.1} parent=1 // pred_check_branch
      %66 = sbr.rel (%p64) target = $region37
    $region36: #{tpu_custom_call.1} parent=1 // pred_region
      %v67 = vld [vmem:[%s2] sm:$0x1]
      %v68 = vunpack.c.l.bf16 %v67
      %v69 = vlaneseq
      %v70 = vshrl.u32 %v69, 7
      %v71 = vsub.s32 0, %v70
      %v72 = vrot.slane %v68, %v71
      %73 = vst [vmem:[#allocation2] sm:$0xff] %v72
      %74 = vst [vmem:[#allocation2 + $0x8] sm:$0xff] %v72
    $region37: #{tpu_custom_call.1} parent=1 // pred_fallthru
      _
    %v75 = vld [vmem:[#allocation2] sm:$0xff]
    %v76 = vld [vmem:[#allocation2 + $0x8] sm:$0xff]
    %v77 = vld [vmem:[#allocation3] sm:$0xf]
    %v78 = vld [vmem:[#allocation3 + $0x4] sm:$0xf]
    %v79 = vld [vmem:[#allocation6] sm:$0xf]
    %v80 = vld [vmem:[#allocation6 + $0x4] sm:$0xf]
    %v81 = vld [vmem:[#allocation6 + $0x8] sm:$0xf]
    %v82 = vld [vmem:[#allocation6 + $0xc] sm:$0xf]
    %v83 = vld [vmem:[#allocation6 + $0x10] sm:$0xf]
    %v84 = vld [vmem:[#allocation6 + $0x14] sm:$0xf]
    %v85 = vld [vmem:[#allocation6 + $0x18] sm:$0xf]
    %v86 = vld [vmem:[#allocation6 + $0x1c] sm:$0xf]
    %v87 = vld [vmem:[#allocation6 + $0x20] sm:$0xf]
    %v88 = vld [vmem:[#allocation6 + $0x24] sm:$0xf]
    %v89 = vld [vmem:[#allocation6 + $0x28] sm:$0xf]
    %v90 = vld [vmem:[#allocation6 + $0x2c] sm:$0xf]
    %v91 = vld [vmem:[#allocation6 + $0x30] sm:$0xf]
    %v92 = vld [vmem:[#allocation6 + $0x34] sm:$0xf]
    %v93 = vld [vmem:[#allocation6 + $0x38] sm:$0xf]
    %v94 = vld [vmem:[#allocation6 + $0x3c] sm:$0xf]
    %v97 = vunpack.c.l.b16 %v77
    %v98 = vunpack.c.l.b16 %v78
    %v99 = vpack.c.b16 %v98, %v97
    %v117 = vunpack.c.l.b16 %v79
    %v118 = vunpack.c.l.b16 %v80
    %v119 = vunpack.c.l.b16 %v81
    %v120 = vunpack.c.l.b16 %v82
    %v121 = vunpack.c.l.b16 %v83
    %v122 = vunpack.c.l.b16 %v84
    %v123 = vunpack.c.l.b16 %v85
    %v124 = vunpack.c.l.b16 %v86
    %v125 = vunpack.c.l.b16 %v87
    %v126 = vunpack.c.l.b16 %v88
    %v127 = vunpack.c.l.b16 %v89
    %v128 = vunpack.c.l.b16 %v90
    %v129 = vunpack.c.l.b16 %v91
    %v130 = vunpack.c.l.b16 %v92
    %v131 = vunpack.c.l.b16 %v93
    %v132 = vunpack.c.l.b16 %v94
    %v133 = vpack.c.b16 %v118, %v117
    %v134 = vpack.c.b16 %v120, %v119
    %v135 = vpack.c.b16 %v122, %v121
    %v136 = vpack.c.b16 %v124, %v123
    %v137 = vpack.c.b16 %v126, %v125
    %v138 = vpack.c.b16 %v128, %v127
    %v139 = vpack.c.b16 %v130, %v129
    %v140 = vpack.c.b16 %v132, %v131
    %149 = vmatprep.subr.bf16.mxu0 0
    %150 = vmatpush1.bf16.msra.mxu0 %v133
    %151 = vmatprep.subr.bf16.mxu0 0
    %152 = vmatpush1.bf16.msra.mxu0 %v134
    %153 = vmatprep.subr.bf16.mxu0 0
    %154 = vmatpush1.bf16.msra.mxu0 %v135
    %155 = vmatprep.subr.bf16.mxu0 0
    %156 = vmatpush1.bf16.msra.mxu0 %v136
    %157 = vmatprep.subr.bf16.mxu0 0
    %158 = vmatpush1.bf16.msra.mxu0 %v137
    %159 = vmatprep.subr.bf16.mxu0 0
    %160 = vmatpush1.bf16.msra.mxu0 %v138
    %161 = vmatprep.subr.bf16.mxu0 0
    %162 = vmatpush1.bf16.msra.mxu0 %v139
    %163 = vmatprep.subr.bf16.mxu0 0
    %164 = vmatpush1.bf16.msra.mxu0 %v140
    %165 = vmatprep.subr.bf16.mxu0 0
    %166 = vmatpush1.bf16.msra.mxu0 0
    %167 = vmatprep.subr.bf16.mxu0 0
    %168 = vmatpush1.bf16.msra.mxu0 0
    %169 = vmatprep.subr.bf16.mxu0 0
    %170 = vmatpush1.bf16.msra.mxu0 0
    %171 = vmatprep.subr.bf16.mxu0 0
    %172 = vmatpush1.bf16.msra.mxu0 0
    %173 = vmatprep.subr.bf16.mxu0 0
    %174 = vmatpush1.bf16.msra.mxu0 0
    %175 = vmatprep.subr.bf16.mxu0 0
    %176 = vmatpush1.bf16.msra.mxu0 0
    %177 = vmatprep.subr.bf16.mxu0 0
    %178 = vmatpush1.bf16.msra.mxu0 0
    %179 = vmatprep.subr.bf16.mxu0 0
    %180 = vmatpush1.bf16.msra.mxu0 0
    %181 = vmatprep.mubr.bf16.mxu0 0
    %182 = vmatmul.mubr.bf16.gmra.mrb[0].mxu0 %v99
    %v183 = vpop.f32.mrb[0].mxu0
    %v184 = vadd.f32 0.0, %v183
    %v185 = vpop.f32.mrb[0].mxu0
    %v186 = vpop.f32.mrb[0].mxu0
    %v187 = vadd.f32 0.0, %v186
    %v188 = vpop.f32.mrb[0].mxu0
    %189 = vdwg.mxu0
    %v190 = vadd.f32 %v75, %v184
    %v191 = vadd.f32 %v76, %v187
    %192 = vst [vmem:[#allocation2] sm:$0xff] %v190
    %193 = vst [vmem:[#allocation2 + $0x8] sm:$0xff] %v191
    // Predicated region
    $region38: #{tpu_custom_call.1} parent=1 // pred_check
      %p194 = pneg %p63
    $region39: #{tpu_custom_call.1} parent=1 // pred_check_branch
      %196 = sbr.rel (%p194) target = $region41
    $region40: #{tpu_custom_call.1} parent=1 // pred_region
      %v197 = vld [vmem:[%s3] sm:$0xf]
      %v198 = vld [vmem:[%s3 + $0x4] sm:$0xf]
      %v199 = vld [vmem:[#allocation8] sm:$0xf]
      %v200 = vld [vmem:[#allocation8 + $0x4] sm:$0xf]
      %v201 = vld [vmem:[#allocation8 + $0x8] sm:$0xf]
      %v202 = vld [vmem:[#allocation8 + $0xc] sm:$0xf]
      %v203 = vld [vmem:[#allocation8 + $0x10] sm:$0xf]
      %v204 = vld [vmem:[#allocation8 + $0x14] sm:$0xf]
      %v205 = vld [vmem:[#allocation8 + $0x18] sm:$0xf]
      %v206 = vld [vmem:[#allocation8 + $0x1c] sm:$0xf]
      %v207 = vld [vmem:[#allocation8 + $0x20] sm:$0xf]
      %v208 = vld [vmem:[#allocation8 + $0x24] sm:$0xf]
      %v209 = vld [vmem:[#allocation8 + $0x28] sm:$0xf]
      %v210 = vld [vmem:[#allocation8 + $0x2c] sm:$0xf]
      %v211 = vld [vmem:[#allocation8 + $0x30] sm:$0xf]
      %v212 = vld [vmem:[#allocation8 + $0x34] sm:$0xf]
      %v213 = vld [vmem:[#allocation8 + $0x38] sm:$0xf]
      %v214 = vld [vmem:[#allocation8 + $0x3c] sm:$0xf]
      %v217 = vunpack.c.l.b16 %v197
      %v218 = vunpack.c.l.b16 %v198
      %v219 = vpack.c.b16 %v218, %v217
      %v237 = vunpack.c.l.b16 %v199
      %v238 = vunpack.c.l.b16 %v200
      %v239 = vunpack.c.l.b16 %v201
      %v240 = vunpack.c.l.b16 %v202
      %v241 = vunpack.c.l.b16 %v203
      %v242 = vunpack.c.l.b16 %v204
      %v243 = vunpack.c.l.b16 %v205
      %v244 = vunpack.c.l.b16 %v206
      %v245 = vunpack.c.l.b16 %v207
      %v246 = vunpack.c.l.b16 %v208
      %v247 = vunpack.c.l.b16 %v209
      %v248 = vunpack.c.l.b16 %v210
      %v249 = vunpack.c.l.b16 %v211
      %v250 = vunpack.c.l.b16 %v212
      %v251 = vunpack.c.l.b16 %v213
      %v252 = vunpack.c.l.b16 %v214
      %v253 = vpack.c.b16 %v238, %v237
      %v254 = vpack.c.b16 %v240, %v239
      %v255 = vpack.c.b16 %v242, %v241
      %v256 = vpack.c.b16 %v244, %v243
      %v257 = vpack.c.b16 %v246, %v245
      %v258 = vpack.c.b16 %v248, %v247
      %v259 = vpack.c.b16 %v250, %v249
      %v260 = vpack.c.b16 %v252, %v251
      %269 = vmatprep.subr.bf16.mxu0 0
      %270 = vmatpush1.bf16.msra.mxu0 %v253
      %271 = vmatprep.subr.bf16.mxu0 0
      %272 = vmatpush1.bf16.msra.mxu0 %v254
      %273 = vmatprep.subr.bf16.mxu0 0
      %274 = vmatpush1.bf16.msra.mxu0 %v255
      %275 = vmatprep.subr.bf16.mxu0 0
      %276 = vmatpush1.bf16.msra.mxu0 %v256
      %277 = vmatprep.subr.bf16.mxu0 0
      %278 = vmatpush1.bf16.msra.mxu0 %v257
      %279 = vmatprep.subr.bf16.mxu0 0
      %280 = vmatpush1.bf16.msra.mxu0 %v258
      %281 = vmatprep.subr.bf16.mxu0 0
      %282 = vmatpush1.bf16.msra.mxu0 %v259
      %283 = vmatprep.subr.bf16.mxu0 0
      %284 = vmatpush1.bf16.msra.mxu0 %v260
      %285 = vmatprep.subr.bf16.mxu0 0
      %286 = vmatpush1.bf16.msra.mxu0 0
      %287 = vmatprep.subr.bf16.mxu0 0
      %288 = vmatpush1.bf16.msra.mxu0 0
      %289 = vmatprep.subr.bf16.mxu0 0
      %290 = vmatpush1.bf16.msra.mxu0 0
      %291 = vmatprep.subr.bf16.mxu0 0
      %292 = vmatpush1.bf16.msra.mxu0 0
      %293 = vmatprep.subr.bf16.mxu0 0
      %294 = vmatpush1.bf16.msra.mxu0 0
      %295 = vmatprep.subr.bf16.mxu0 0
      %296 = vmatpush1.bf16.msra.mxu0 0
      %297 = vmatprep.subr.bf16.mxu0 0
      %298 = vmatpush1.bf16.msra.mxu0 0
      %299 = vmatprep.subr.bf16.mxu0 0
      %300 = vmatpush1.bf16.msra.mxu0 0
      %301 = vmatprep.mubr.bf16.mxu0 0
      %302 = vmatmul.mubr.bf16.gmra.mrb[0].mxu0 %v219
      %v303 = vpop.f32.mrb[0].mxu0
      %v304 = vadd.f32 0.0, %v303
      %v305 = vpop.f32.mrb[0].mxu0
      %v306 = vpop.f32.mrb[0].mxu0
      %v307 = vadd.f32 0.0, %v306
      %v308 = vpop.f32.mrb[0].mxu0
      %309 = vdwg.mxu0
      %v310 = vld [vmem:[#allocation2] sm:$0xff]
      %v311 = vld [vmem:[#allocation2 + $0x8] sm:$0xff]
      %v312 = vadd.f32 %v310, %v304
      %v313 = vadd.f32 %v311, %v307
      %v314 = vpack.c.bf16 %v313, %v312
      %v316 = vunpack.c.l.b16 %v314
      %v317 = vunpack.c.h.b16 %v314
      %v318 = vpack.c.b16 %v316, %v316
      %v319 = vpack.c.b16 %v317, %v317
      %322 = vst [vmem:[#allocation9] sm:$0xf] %v318
      %323 = vst [vmem:[#allocation9 + $0x4] sm:$0xf] %v319
    $region41: #{tpu_custom_call.1} parent=1 // pred_fallthru
      _
    // Predicated region
    $region42: #{tpu_custom_call.1} parent=1 // pred_check
      _
    $region43: #{tpu_custom_call.1} parent=1 // pred_check_branch
      %325 = sbr.rel (0) target = $region45
    $region44: #{tpu_custom_call.1} parent=1 // pred_region
      %s327 = ssub.s32 128, 128
      %328 = vsyncadd [#allocation5], %s327
      %s329 = sshll.u32 [#allocation9], 4
      %s330 = int_to_ptr.vmem [resolvable:$true] %s329
      %335 = dma.vmem_to_hbm [thread:$0]  %s330, 128, %s5, [#allocation5], 64, 64, 4
    $region45: #{tpu_custom_call.1} parent=1 // pred_fallthru
      _
    // Predicated region
    $region46: #{tpu_custom_call.1} parent=1 // pred_check
      _
    $region47: #{tpu_custom_call.1} parent=1 // pred_check_branch
      %337 = sbr.rel (0) target = $region49
    $region48: #{tpu_custom_call.1} parent=1 // pred_region
      %338 = dma.done [#allocation5], 128
    $region49: #{tpu_custom_call.1} parent=1 // pred_fallthru
      _
    %339 = vsyncpa [#allocation4], 1
    %340 = vsyncpa [#allocation7], 1
    %341 = vsyncpa [#allocation5], 1

</llo_original>
